<compile_context>
chip_gen: v7x
topology: tpu7x:2x2x1
jax: 0.10.0
libtpu: 0.0.40
codegen_flags: <defaults>
</compile_context>

<pallas_src>
import jax
import jax.numpy as jnp
from jax.experimental import pallas as pl
from jax.experimental.pallas import tpu as pltpu


def _round_up(x: int, m: int) -> int:
    return (x + m - 1) // m * m


def _frame_head_kernel(x_ref, w_ref, b_ref, o_ref):
    """One row tile: logits = x @ W + b ; out = log_softmax(logits).T

    x_ref : (TILE_ROWS, F)   compute dtype (bf16)
    w_ref : (F, C_pad)       compute dtype (bf16), zero-padded class columns
    b_ref : (1, C_pad)       f32; padded classes hold a large negative value
    o_ref : (C, TILE_ROWS)   f32 log-probabilities, lane-dense store
    """
    logits = jnp.dot(x_ref[...], w_ref[...],
                     preferred_element_type=jnp.float32) + b_ref[...]
    # Max-shifted log-softmax in f32.  Padded classes carry bias=-1e30 so they
    # contribute exp(.) == 0 and never win the max.
    m = jnp.max(logits, axis=-1, keepdims=True)
    shifted = logits - m
    lse = jnp.log(jnp.sum(jnp.exp(shifted), axis=-1, keepdims=True))
    out = shifted - lse                       # (TILE_ROWS, C_pad) f32
    # 128x128-aligned transpose (XLU) -> rows land on the 128-lane axis, then
    # keep only the real classes; the store is unmasked and lane-dense.
    out_t = out.T                             # (C_pad, TILE_ROWS)
    o_ref[...] = out_t[:o_ref.shape[0], :].astype(o_ref.dtype)


def frame_classifier_forward(sequences, weight, bias, *,
                             tile_rows: int = 512,
                             compute_dtype=jnp.bfloat16):
    """sequences: (B, T, F) float32 -> (B, T, C) float32 log-probabilities."""
    B, T, F = sequences.shape
    Fw, C = weight.shape
    assert F == Fw, (F, Fw)
    assert bias.shape == (C,), bias.shape

    rows = B * T
    # Keep tiles (and the in-kernel transpose) 128-aligned; don't exceed what
    # the problem needs.  Even a 4096-row bf16 tile at F<=1024 is far below
    # the scoped-VMEM default (and v7x's 64 MiB VMEM).
    tile_rows = max(128, min(_round_up(tile_rows, 128), _round_up(rows, 128)))
    rows_p = _round_up(rows, tile_rows)
    c_pad = _round_up(C, 128)

    # bf16 inputs halve HBM read traffic; accumulation + softmax stay in f32.
    x2d = sequences.reshape(rows, F).astype(compute_dtype)
    if rows_p != rows:
        x2d = jnp.pad(x2d, ((0, rows_p - rows), (0, 0)))

    # Pad the class axis in VMEM only: zero weight columns and a large
    # negative bias so padded classes contribute exp(.) = 0 to the softmax.
    w_pad = jnp.pad(weight.astype(compute_dtype), ((0, 0), (0, c_pad - C)))
    b_pad = jnp.pad(bias.astype(jnp.float32).reshape(1, C),
                    ((0, 0), (0, c_pad - C)), constant_values=-1e30)

    grid = (rows_p // tile_rows,)
    out_t = pl.pallas_call(
        _frame_head_kernel,
        out_shape=jax.ShapeDtypeStruct((C, rows_p), jnp.float32),
        grid=grid,
        in_specs=[
            pl.BlockSpec((tile_rows, F), lambda i: (i, 0)),   # streamed x tile
            pl.BlockSpec((F, c_pad), lambda i: (0, 0)),       # VMEM-resident W
            pl.BlockSpec((1, c_pad), lambda i: (0, 0)),       # VMEM-resident b
        ],
        out_specs=pl.BlockSpec((C, tile_rows), lambda i: (0, i)),
        compiler_params=pltpu.CompilerParams(
            dimension_semantics=("parallel",)),               # megacore-shardable
    )(x2d, w_pad, b_pad)

    # (C, rows) -> (B, T, C); the tiny transpose back is left to XLA.
    return out_t[:, :rows].T.reshape(B, T, C)


def _reference(sequences, weight, bias, compute_dtype=jnp.bfloat16):
    # Same bf16 input rounding as the kernel; f32 accumulate + f32 softmax.
    x = sequences.astype(compute_dtype).astype(jnp.float32)
    w = weight.astype(compute_dtype).astype(jnp.float32)
    logits = jnp.einsum("btf,fc->btc", x, w) + bias
    return jax.nn.log_softmax(logits, axis=-1)


if __name__ == "__main__":
    key = jax.random.PRNGKey(0)
    k_x, k_w, k_b = jax.random.split(key, 3)

    # Small shapes consistent with forward(): (batch, n_samples, n_features).
    B, T, F, C = 2, 8, 32, 4
    x = jax.random.normal(k_x, (B, T, F), dtype=jnp.float32)

    # Deterministic synthetic parameters (no checkpoint load).
    weight = jax.random.normal(k_w, (F, C), dtype=jnp.float32) * 0.1
    bias = jax.random.normal(k_b, (C,), dtype=jnp.float32) * 0.01

    out = frame_classifier_forward(x, weight, bias)
    out = jax.block_until_ready(out)

    ref = _reference(x, weight, bias)
    assert out.shape == (B, T, C), out.shape
    err = float(jnp.max(jnp.abs(out - ref)))
    assert jnp.allclose(out, ref, atol=1e-4, rtol=1e-4), f"mismatch vs reference: {err}"

    print("KERNEL_OK")
</pallas_src>

<mosaic_0001>
module attributes {stable_mosaic.version = 11 : i64} {
  func.func @_frame_head_kernel(%arg0: i32, %arg1: memref<128x32xbf16, #tpu.memory_space<vmem>>, %arg2: memref<32x128xbf16, #tpu.memory_space<vmem>>, %arg3: memref<1x128xf32, #tpu.memory_space<vmem>>, %arg4: memref<4x128xf32, #tpu.memory_space<vmem>>) attributes {dimension_semantics = [#tpu.dimension_semantics<parallel>], iteration_bounds = array<i64: 1>, scalar_prefetch = 0 : i64, scratch_operands = 0 : i64, tpu.core_type = #tpu.core_type<tc>, window_params = [{transform_indices = @transform_0, window_bounds = array<i64: 128, 32>}, {pipeline_mode = #tpu.pipeline_mode<synchronous>, transform_indices = @transform_1, window_bounds = array<i64: 32, 128>}, {pipeline_mode = #tpu.pipeline_mode<synchronous>, transform_indices = @transform_2, window_bounds = array<i64: 1, 128>}, {transform_indices = @transform_3, window_bounds = array<i64: 4, 128>}]} {
    %c0 = arith.constant 0 : index
    %c0_0 = arith.constant 0 : index
    %0 = vector.load %arg1[%c0, %c0_0] : memref<128x32xbf16, #tpu.memory_space<vmem>>, vector<128x32xbf16>
    %c0_1 = arith.constant 0 : index
    %c0_2 = arith.constant 0 : index
    %1 = vector.load %arg2[%c0_1, %c0_2] : memref<32x128xbf16, #tpu.memory_space<vmem>>, vector<32x128xbf16>
    %cst = arith.constant dense<0.000000e+00> : vector<128x128xf32>
    %2 = tpu.matmul %0, %1, %cst {dimension_numbers = #tpu.dot_dimension_numbers<[1], [0], [0], [1], [0, 0, 1, 1], [], []>} : vector<128x32xbf16>, vector<32x128xbf16>, vector<128x128xf32> -> vector<128x128xf32>
    %c0_3 = arith.constant 0 : index
    %c0_4 = arith.constant 0 : index
    %3 = vector.load %arg3[%c0_3, %c0_4] : memref<1x128xf32, #tpu.memory_space<vmem>>, vector<1x128xf32>
    %4 = vector.broadcast %3 : vector<1x128xf32> to vector<128x128xf32>
    %5 = arith.addf %2, %4 : vector<128x128xf32>
    %cst_5 = arith.constant dense<0xFF800000> : vector<128xf32>
    %6 = vector.multi_reduction <maximumf>, %5, %cst_5 [1] : vector<128x128xf32> to vector<128xf32>
    %7 = vector.shape_cast %6 : vector<128xf32> to vector<128x1xf32>
    %8 = vector.broadcast %7 : vector<128x1xf32> to vector<128x128xf32>
    %9 = arith.subf %5, %8 : vector<128x128xf32>
    %10 = math.exp %9 : vector<128x128xf32>
    %cst_6 = arith.constant dense<0.000000e+00> : vector<128xf32>
    %11 = vector.multi_reduction <add>, %10, %cst_6 [1] : vector<128x128xf32> to vector<128xf32>
    %12 = vector.shape_cast %11 : vector<128xf32> to vector<128x1xf32>
    %13 = math.log %12 : vector<128x1xf32>
    %14 = vector.broadcast %13 : vector<128x1xf32> to vector<128x128xf32>
    %15 = arith.subf %9, %14 : vector<128x128xf32>
    %16 = tpu.transpose %15, [1, 0] : vector<128x128xf32> -> vector<128x128xf32>
    %17 = vector.extract_strided_slice %16 {offsets = [0, 0], sizes = [4, 128], strides = [1, 1]} : vector<128x128xf32> to vector<4x128xf32>
    %c0_7 = arith.constant 0 : index
    %c0_8 = arith.constant 0 : index
    %18 = vector.load %arg4[%c0_7, %c0_8] : memref<4x128xf32, #tpu.memory_space<vmem>>, vector<4x128xf32>
    tpu.vector_store %arg4[%c0_7, %c0_8], %17 {strides = array<i32>} : memref<4x128xf32, #tpu.memory_space<vmem>>, vector<4x128xf32>,
    return
  }
  func.func @transform_0(%arg0: i32) -> (i32, i32) {
    %c0_i32 = arith.constant 0 : i32
    %c0_i32_0 = arith.constant 0 : i32
    return %arg0, %c0_i32 : i32, i32
  }
  func.func @transform_1(%arg0: i32) -> (i32, i32) {
    %c0_i32 = arith.constant 0 : i32
    %c0_i32_0 = arith.constant 0 : i32
    %c0_i32_1 = arith.constant 0 : i32
    return %c0_i32, %c0_i32_0 : i32, i32
  }
  func.func @transform_2(%arg0: i32) -> (i32, i32) {
    %c0_i32 = arith.constant 0 : i32
    %c0_i32_0 = arith.constant 0 : i32
    %c0_i32_1 = arith.constant 0 : i32
    return %c0_i32, %c0_i32_0 : i32, i32
  }
  func.func @transform_3(%arg0: i32) -> (i32, i32) {
    %c0_i32 = arith.constant 0 : i32
    %c0_i32_0 = arith.constant 0 : i32
    return %c0_i32, %arg0 : i32, i32
  }
}

</mosaic_0001>

<llo_original>
// kernel: tpu_custom_call.1
$region0: #{tpu_custom_call.1}
  #allocation0 [shape = 'u32[]', space=smem, size = 0x4, offset = 0x4, fixed_abs, tag = 'smem constant byte address 0x4 - core index']
  #allocation1 [shape = 'u32[144,128]{1,0:T(1,128)}', space=vmem, size = 0x12000, scoped, tag = 'internal scratch']
  %s0 = inlined_call_operand.vmem [shape: bf16[128,32], index: 0, kind: input, shape index: {}]
  %s1 = inlined_call_operand.vmem [shape: bf16[32,128], index: 1, kind: input, shape index: {}]
  %s2 = inlined_call_operand.vmem [shape: f32[1,128], index: 2, kind: input, shape index: {}]
  %s3 = inlined_call_operand.hbm [shape: f32[4,128], index: 3, kind: output, shape index: {}]
  %s4 = sld [smem:[#allocation0]]
  $region22: #{tpu_custom_call.1} parent=0
    _
  %s6 = ssub.s32 1, %s4
  %s7 = scalar_select 0, %s6, %s4
  $region1: #{tpu_custom_call.1} parent=0
    #allocation2 [shape = 'u8[2048]{0}', space=vmem, size = 0x800, scoped, tag = 'output window, operand 0, single buffered']
    #allocation3 [shape = 's32[1]{0}', space=sflag, size = 0x4, scoped, tag = 'scoped memory for tpu_custom_call.1']
    %8 = vsyncpa [#allocation3], 0
    // Predicated region
    $region2: #{tpu_custom_call.1} parent=1 // pred_check
      _
    $region3: #{tpu_custom_call.1} parent=1 // pred_check_branch
      %10 = sbr.rel (0) target = $region5
    $region4: #{tpu_custom_call.1} parent=1 // pred_region
      _
    $region5: #{tpu_custom_call.1} parent=1 // pred_fallthru
      _
    // Predicated region
    $region6: #{tpu_custom_call.1} parent=1 // pred_check
      _
    $region7: #{tpu_custom_call.1} parent=1 // pred_check_branch
      %12 = sbr.rel (0) target = $region9
    $region8: #{tpu_custom_call.1} parent=1 // pred_region
      _
    $region9: #{tpu_custom_call.1} parent=1 // pred_fallthru
      _
    // Predicated region
    $region10: #{tpu_custom_call.1} parent=1 // pred_check
      _
    $region11: #{tpu_custom_call.1} parent=1 // pred_check_branch
      %14 = sbr.rel (0) target = $region13
    $region12: #{tpu_custom_call.1} parent=1 // pred_region
      _
    $region13: #{tpu_custom_call.1} parent=1 // pred_fallthru
      _
    %v16 = vld [vmem:[%s0] sm:$0xf]
    %v17 = vld [vmem:[%s0 + $0x4] sm:$0xf]
    %v18 = vld [vmem:[%s0 + $0x8] sm:$0xf]
    %v19 = vld [vmem:[%s0 + $0xc] sm:$0xf]
    %v20 = vld [vmem:[%s0 + $0x10] sm:$0xf]
    %v21 = vld [vmem:[%s0 + $0x14] sm:$0xf]
    %v22 = vld [vmem:[%s0 + $0x18] sm:$0xf]
    %v23 = vld [vmem:[%s0 + $0x1c] sm:$0xf]
    %v24 = vld [vmem:[%s0 + $0x20] sm:$0xf]
    %v25 = vld [vmem:[%s0 + $0x24] sm:$0xf]
    %v26 = vld [vmem:[%s0 + $0x28] sm:$0xf]
    %v27 = vld [vmem:[%s0 + $0x2c] sm:$0xf]
    %v28 = vld [vmem:[%s0 + $0x30] sm:$0xf]
    %v29 = vld [vmem:[%s0 + $0x34] sm:$0xf]
    %v30 = vld [vmem:[%s0 + $0x38] sm:$0xf]
    %v31 = vld [vmem:[%s0 + $0x3c] sm:$0xf]
    %v32 = vld [vmem:[%s1] sm:$0xf]
    %v33 = vld [vmem:[%s1 + $0x4] sm:$0xf]
    %v34 = vld [vmem:[%s1 + $0x8] sm:$0xf]
    %v35 = vld [vmem:[%s1 + $0xc] sm:$0xf]
    %v36 = vld [vmem:[%s2] sm:$0x1]
    %v38 = vlaneseq
    %v39 = vshrl.u32 %v38, 7
    %v40 = vsub.s32 0, %v39
    %v41 = vrot.slane %v36, %v40
    %v59 = vunpack.c.l.b16 %v16
    %v60 = vunpack.c.l.b16 %v17
    %v61 = vunpack.c.l.b16 %v18
    %v62 = vunpack.c.l.b16 %v19
    %v63 = vunpack.c.l.b16 %v20
    %v64 = vunpack.c.l.b16 %v21
    %v65 = vunpack.c.l.b16 %v22
    %v66 = vunpack.c.l.b16 %v23
    %v67 = vunpack.c.l.b16 %v24
    %v68 = vunpack.c.l.b16 %v25
    %v69 = vunpack.c.l.b16 %v26
    %v70 = vunpack.c.l.b16 %v27
    %v71 = vunpack.c.l.b16 %v28
    %v72 = vunpack.c.l.b16 %v29
    %v73 = vunpack.c.l.b16 %v30
    %v74 = vunpack.c.l.b16 %v31
    %v75 = vpack.c.b16 %v60, %v59
    %v76 = vpack.c.b16 %v62, %v61
    %v77 = vpack.c.b16 %v64, %v63
    %v78 = vpack.c.b16 %v66, %v65
    %v79 = vpack.c.b16 %v68, %v67
    %v80 = vpack.c.b16 %v70, %v69
    %v81 = vpack.c.b16 %v72, %v71
    %v82 = vpack.c.b16 %v74, %v73
    %v87 = vunpack.c.l.b16 %v32
    %v88 = vunpack.c.l.b16 %v33
    %v89 = vunpack.c.l.b16 %v34
    %v90 = vunpack.c.l.b16 %v35
    %v91 = vpack.c.b16 %v88, %v87
    %v92 = vpack.c.b16 %v90, %v89
    %vm95 = vcmask 261120
    %v97 = vsel %vm95, %v75, 0
    %v100 = vsel %vm95, %v76, 0
    %v103 = vsel %vm95, %v77, 0
    %v106 = vsel %vm95, %v78, 0
    %v109 = vsel %vm95, %v79, 0
    %v112 = vsel %vm95, %v80, 0
    %v115 = vsel %vm95, %v81, 0
    %v118 = vsel %vm95, %v82, 0
    %120 = vmatprep.subr.bf16.mxu0 0
    %121 = vmatpush1.bf16.msra.mxu0 %v91
    %122 = vmatprep.subr.bf16.mxu0 0
    %123 = vmatpush1.bf16.msra.mxu0 %v92
    %124 = vmatprep.subr.bf16.mxu0 0
    %125 = vmatpush1.bf16.msra.mxu0 0
    %126 = vmatprep.subr.bf16.mxu0 0
    %127 = vmatpush1.bf16.msra.mxu0 0
    %128 = vmatprep.subr.bf16.mxu0 0
    %129 = vmatpush1.bf16.msra.mxu0 0
    %130 = vmatprep.subr.bf16.mxu0 0
    %131 = vmatpush1.bf16.msra.mxu0 0
    %132 = vmatprep.subr.bf16.mxu0 0
    %133 = vmatpush1.bf16.msra.mxu0 0
    %134 = vmatprep.subr.bf16.mxu0 0
    %135 = vmatpush1.bf16.msra.mxu0 0
    %136 = vmatprep.subr.bf16.mxu0 0
    %137 = vmatpush1.bf16.msra.mxu0 0
    %138 = vmatprep.subr.bf16.mxu0 0
    %139 = vmatpush1.bf16.msra.mxu0 0
    %140 = vmatprep.subr.bf16.mxu0 0
    %141 = vmatpush1.bf16.msra.mxu0 0
    %142 = vmatprep.subr.bf16.mxu0 0
    %143 = vmatpush1.bf16.msra.mxu0 0
    %144 = vmatprep.subr.bf16.mxu0 0
    %145 = vmatpush1.bf16.msra.mxu0 0
    %146 = vmatprep.subr.bf16.mxu0 0
    %147 = vmatpush1.bf16.msra.mxu0 0
    %148 = vmatprep.subr.bf16.mxu0 0
    %149 = vmatpush1.bf16.msra.mxu0 0
    %150 = vmatprep.subr.bf16.mxu0 0
    %151 = vmatpush1.bf16.msra.mxu0 0
    %152 = vmatprep.mubr.bf16.mxu0 0
    %153 = vmatmul.mubr.bf16.gmra.mrb[0].mxu0 %v97
    %v154 = vpop.f32.mrb[0].mxu0
    %v155 = vadd.f32 %v41, %v154
    %v156 = vpop.f32.mrb[0].mxu0
    %v157 = vpop.f32.mrb[0].mxu0
    %v158 = vadd.f32 %v41, %v157
    %v159 = vpop.f32.mrb[0].mxu0
    %160 = vmatprep.mubr.bf16.mxu0 0
    %161 = vmatmul.mubr.bf16.gmra.mrb[0].mxu0 %v100
    %v162 = vpop.f32.mrb[0].mxu0
    %v163 = vadd.f32 %v41, %v162
    %v164 = vpop.f32.mrb[0].mxu0
    %v165 = vpop.f32.mrb[0].mxu0
    %v166 = vadd.f32 %v41, %v165
    %v167 = vpop.f32.mrb[0].mxu0
    %168 = vmatprep.mubr.bf16.mxu0 0
    %169 = vmatmul.mubr.bf16.gmra.mrb[0].mxu0 %v103
    %v170 = vpop.f32.mrb[0].mxu0
    %v171 = vadd.f32 %v41, %v170
    %v172 = vpop.f32.mrb[0].mxu0
    %v173 = vpop.f32.mrb[0].mxu0
    %v174 = vadd.f32 %v41, %v173
    %v175 = vpop.f32.mrb[0].mxu0
    %176 = vmatprep.mubr.bf16.mxu0 0
    %177 = vmatmul.mubr.bf16.gmra.mrb[0].mxu0 %v106
    %v178 = vpop.f32.mrb[0].mxu0
    %v179 = vadd.f32 %v41, %v178
    %v180 = vpop.f32.mrb[0].mxu0
    %v181 = vpop.f32.mrb[0].mxu0
    %v182 = vadd.f32 %v41, %v181
    %v183 = vpop.f32.mrb[0].mxu0
    %184 = vmatprep.mubr.bf16.mxu0 0
    %185 = vmatmul.mubr.bf16.gmra.mrb[0].mxu0 %v109
    %v186 = vpop.f32.mrb[0].mxu0
    %v187 = vadd.f32 %v41, %v186
    %v188 = vpop.f32.mrb[0].mxu0
    %v189 = vpop.f32.mrb[0].mxu0
    %v190 = vadd.f32 %v41, %v189
    %v191 = vpop.f32.mrb[0].mxu0
    %192 = vmatprep.mubr.bf16.mxu0 0
    %193 = vmatmul.mubr.bf16.gmra.mrb[0].mxu0 %v112
    %v194 = vpop.f32.mrb[0].mxu0
    %v195 = vadd.f32 %v41, %v194
    %v196 = vpop.f32.mrb[0].mxu0
    %v197 = vpop.f32.mrb[0].mxu0
    %v198 = vadd.f32 %v41, %v197
    %v199 = vpop.f32.mrb[0].mxu0
    %200 = vmatprep.mubr.bf16.mxu0 0
    %201 = vmatmul.mubr.bf16.gmra.mrb[0].mxu0 %v115
    %v202 = vpop.f32.mrb[0].mxu0
    %v203 = vadd.f32 %v41, %v202
    %v204 = vpop.f32.mrb[0].mxu0
    %v205 = vpop.f32.mrb[0].mxu0
    %v206 = vadd.f32 %v41, %v205
    %v207 = vpop.f32.mrb[0].mxu0
    %208 = vmatprep.mubr.bf16.mxu0 0
    %209 = vmatmul.mubr.bf16.gmra.mrb[0].mxu0 %v118
    %v210 = vpop.f32.mrb[0].mxu0
    %v211 = vadd.f32 %v41, %v210
    %v212 = vpop.f32.mrb[0].mxu0
    %v213 = vpop.f32.mrb[0].mxu0
    %v214 = vadd.f32 %v41, %v213
    %v215 = vpop.f32.mrb[0].mxu0
    %216 = vdwg.mxu0
    %217 = vmax.xlane.f32.xlu0 %v155
    %v218 = vpop.xlane.xlu0 %217
    %219 = vmax.xlane.f32.xlu0 %v158
    %v220 = vpop.xlane.xlu0 %219
    %221 = vmax.xlane.f32.xlu0 %v163
    %v222 = vpop.xlane.xlu0 %221
    %223 = vmax.xlane.f32.xlu0 %v166
    %v224 = vpop.xlane.xlu0 %223
    %225 = vmax.xlane.f32.xlu0 %v171
    %v226 = vpop.xlane.xlu0 %225
    %227 = vmax.xlane.f32.xlu0 %v174
    %v228 = vpop.xlane.xlu0 %227
    %229 = vmax.xlane.f32.xlu0 %v179
    %v230 = vpop.xlane.xlu0 %229
    %231 = vmax.xlane.f32.xlu0 %v182
    %v232 = vpop.xlane.xlu0 %231
    %233 = vmax.xlane.f32.xlu0 %v187
    %v234 = vpop.xlane.xlu0 %233
    %235 = vmax.xlane.f32.xlu0 %v190
    %v236 = vpop.xlane.xlu0 %235
    %237 = vmax.xlane.f32.xlu0 %v195
    %v238 = vpop.xlane.xlu0 %237
    %239 = vmax.xlane.f32.xlu0 %v198
    %v240 = vpop.xlane.xlu0 %239
    %241 = vmax.xlane.f32.xlu0 %v203
    %v242 = vpop.xlane.xlu0 %241
    %243 = vmax.xlane.f32.xlu0 %v206
    %v244 = vpop.xlane.xlu0 %243
    %245 = vmax.xlane.f32.xlu0 %v211
    %v246 = vpop.xlane.xlu0 %245
    %247 = vmax.xlane.f32.xlu0 %v214
    %v248 = vpop.xlane.xlu0 %247
    %v249 = vsub.f32 %v155, %v218
    %v250 = vsub.f32 %v158, %v220
    %v251 = vsub.f32 %v163, %v222
    %v252 = vsub.f32 %v166, %v224
    %v253 = vsub.f32 %v171, %v226
    %v254 = vsub.f32 %v174, %v228
    %v255 = vsub.f32 %v179, %v230
    %v256 = vsub.f32 %v182, %v232
    %v257 = vsub.f32 %v187, %v234
    %v258 = vsub.f32 %v190, %v236
    %v259 = vsub.f32 %v195, %v238
    %v260 = vsub.f32 %v198, %v240
    %v261 = vsub.f32 %v203, %v242
    %v262 = vsub.f32 %v206, %v244
    %v263 = vsub.f32 %v211, %v246
    %v264 = vsub.f32 %v214, %v248
    %v265 = vmul.f32 %v249, 1.442695
    %v266 = vpow.pop %v265
    %v267 = vmul.f32 %v250, 1.442695
    %v268 = vpow.pop %v267
    %v269 = vmul.f32 %v251, 1.442695
    %v270 = vpow.pop %v269
    %v271 = vmul.f32 %v252, 1.442695
    %v272 = vpow.pop %v271
    %v273 = vmul.f32 %v253, 1.442695
    %v274 = vpow.pop %v273
    %v275 = vmul.f32 %v254, 1.442695
    %v276 = vpow.pop %v275
    %v277 = vmul.f32 %v255, 1.442695
    %v278 = vpow.pop %v277
    %v279 = vmul.f32 %v256, 1.442695
    %v280 = vpow.pop %v279
    %v281 = vmul.f32 %v257, 1.442695
    %v282 = vpow.pop %v281
    %v283 = vmul.f32 %v258, 1.442695
    %v284 = vpow.pop %v283
    %v285 = vmul.f32 %v259, 1.442695
    %v286 = vpow.pop %v285
    %v287 = vmul.f32 %v260, 1.442695
    %v288 = vpow.pop %v287
    %v289 = vmul.f32 %v261, 1.442695
    %v290 = vpow.pop %v289
    %v291 = vmul.f32 %v262, 1.442695
    %v292 = vpow.pop %v291
    %v293 = vmul.f32 %v263, 1.442695
    %v294 = vpow.pop %v293
    %v295 = vmul.f32 %v264, 1.442695
    %v296 = vpow.pop %v295
    %297 = vadd.xlane.f32.xlu0 %v266
    %v298 = vpop.xlane.xlu0 %297
    %299 = vadd.xlane.f32.xlu0 %v268
    %v300 = vpop.xlane.xlu0 %299
    %301 = vadd.xlane.f32.xlu0 %v270
    %v302 = vpop.xlane.xlu0 %301
    %303 = vadd.xlane.f32.xlu0 %v272
    %v304 = vpop.xlane.xlu0 %303
    %305 = vadd.xlane.f32.xlu0 %v274
    %v306 = vpop.xlane.xlu0 %305
    %307 = vadd.xlane.f32.xlu0 %v276
    %v308 = vpop.xlane.xlu0 %307
    %309 = vadd.xlane.f32.xlu0 %v278
    %v310 = vpop.xlane.xlu0 %309
    %311 = vadd.xlane.f32.xlu0 %v280
    %v312 = vpop.xlane.xlu0 %311
    %313 = vadd.xlane.f32.xlu0 %v282
    %v314 = vpop.xlane.xlu0 %313
    %315 = vadd.xlane.f32.xlu0 %v284
    %v316 = vpop.xlane.xlu0 %315
    %317 = vadd.xlane.f32.xlu0 %v286
    %v318 = vpop.xlane.xlu0 %317
    %319 = vadd.xlane.f32.xlu0 %v288
    %v320 = vpop.xlane.xlu0 %319
    %321 = vadd.xlane.f32.xlu0 %v290
    %v322 = vpop.xlane.xlu0 %321
    %323 = vadd.xlane.f32.xlu0 %v292
    %v324 = vpop.xlane.xlu0 %323
    %325 = vadd.xlane.f32.xlu0 %v294
    %v326 = vpop.xlane.xlu0 %325
    %327 = vadd.xlane.f32.xlu0 %v296
    %v328 = vpop.xlane.xlu0 %327
    %v329 = vlog2.pop %v298
    %v330 = vmul.f32 %v329, 0.6931472
    %v331 = vlog2.pop %v300
    %v332 = vmul.f32 %v331, 0.6931472
    %v333 = vlog2.pop %v302
    %v334 = vmul.f32 %v333, 0.6931472
    %v335 = vlog2.pop %v304
    %v336 = vmul.f32 %v335, 0.6931472
    %v337 = vlog2.pop %v306
    %v338 = vmul.f32 %v337, 0.6931472
    %v339 = vlog2.pop %v308
    %v340 = vmul.f32 %v339, 0.6931472
    %v341 = vlog2.pop %v310
    %v342 = vmul.f32 %v341, 0.6931472
    %v343 = vlog2.pop %v312
    %v344 = vmul.f32 %v343, 0.6931472
    %v345 = vlog2.pop %v314
    %v346 = vmul.f32 %v345, 0.6931472
    %v347 = vlog2.pop %v316
    %v348 = vmul.f32 %v347, 0.6931472
    %v349 = vlog2.pop %v318
    %v350 = vmul.f32 %v349, 0.6931472
    %v351 = vlog2.pop %v320
    %v352 = vmul.f32 %v351, 0.6931472
    %v353 = vlog2.pop %v322
    %v354 = vmul.f32 %v353, 0.6931472
    %v355 = vlog2.pop %v324
    %v356 = vmul.f32 %v355, 0.6931472
    %v357 = vlog2.pop %v326
    %v358 = vmul.f32 %v357, 0.6931472
    %v359 = vlog2.pop %v328
    %v360 = vmul.f32 %v359, 0.6931472
    %v361 = vsub.f32 %v249, %v330
    %v362 = vsub.f32 %v250, %v332
    %v363 = vsub.f32 %v251, %v334
    %v364 = vsub.f32 %v252, %v336
    %v365 = vsub.f32 %v253, %v338
    %v366 = vsub.f32 %v254, %v340
    %v367 = vsub.f32 %v255, %v342
    %v368 = vsub.f32 %v256, %v344
    %v369 = vsub.f32 %v257, %v346
    %v370 = vsub.f32 %v258, %v348
    %v371 = vsub.f32 %v259, %v350
    %v372 = vsub.f32 %v260, %v352
    %v373 = vsub.f32 %v261, %v354
    %v374 = vsub.f32 %v262, %v356
    %v375 = vsub.f32 %v263, %v358
    %v376 = vsub.f32 %v264, %v360
    %377 = vxpose.xlu0.b32.start [1/16] %v361, 128
    %378 = vxpose.xlu0.b32.cont [2/16] %v362, 128
    %379 = vxpose.xlu0.b32.cont [3/16] %v363, 128
    %380 = vxpose.xlu0.b32.cont [4/16] %v364, 128
    %381 = vxpose.xlu0.b32.cont [5/16] %v365, 128
    %382 = vxpose.xlu0.b32.cont [6/16] %v366, 128
    %383 = vxpose.xlu0.b32.cont [7/16] %v367, 128
    %384 = vxpose.xlu0.b32.cont [8/16] %v368, 128
    %385 = vxpose.xlu0.b32.cont [9/16] %v369, 128
    %386 = vxpose.xlu0.b32.cont [10/16] %v370, 128
    %387 = vxpose.xlu0.b32.cont [11/16] %v371, 128
    %388 = vxpose.xlu0.b32.cont [12/16] %v372, 128
    %389 = vxpose.xlu0.b32.cont [13/16] %v373, 128
    %390 = vxpose.xlu0.b32.cont [14/16] %v374, 128
    %391 = vxpose.xlu0.b32.cont [15/16] %v375, 128
    %392 = vxpose.xlu0.b32.end [16/16] %v376, 128
    %v393 = vpop.trf.xlu0
    %v394 = vpop.trf.xlu0
    %v395 = vpop.trf.xlu0
    %v396 = vpop.trf.xlu0
    %v397 = vpop.trf.xlu0
    %v398 = vpop.trf.xlu0
    %v399 = vpop.trf.xlu0
    %v400 = vpop.trf.xlu0
    %v401 = vpop.trf.xlu0
    %v402 = vpop.trf.xlu0
    %v403 = vpop.trf.xlu0
    %v404 = vpop.trf.xlu0
    %v405 = vpop.trf.xlu0
    %v406 = vpop.trf.xlu0
    %v407 = vpop.trf.xlu0
    %v408 = vpop.trf.xlu0
    %409 = vst [vmem:[#allocation2] sm:$0xf] %v393
    // Predicated region
    $region14: #{tpu_custom_call.1} parent=1 // pred_check
      _
    $region15: #{tpu_custom_call.1} parent=1 // pred_check_branch
      %411 = sbr.rel (0) target = $region17
    $region16: #{tpu_custom_call.1} parent=1 // pred_region
      %s413 = ssub.s32 64, 64
      %414 = vsyncadd [#allocation3], %s413
      %s416 = sshll.u32 [#allocation2], 4
      %s417 = int_to_ptr.vmem [resolvable:$true] %s416
      %419 = dma.vmem_to_hbm [thread:$0]  %s417, 64, %s3, [#allocation3]
    $region17: #{tpu_custom_call.1} parent=1 // pred_fallthru
      _
    // Predicated region
    $region18: #{tpu_custom_call.1} parent=1 // pred_check
      _
    $region19: #{tpu_custom_call.1} parent=1 // pred_check_branch
      %421 = sbr.rel (0) target = $region21
    $region20: #{tpu_custom_call.1} parent=1 // pred_region
      %422 = dma.done [#allocation3], 64
    $region21: #{tpu_custom_call.1} parent=1 // pred_fallthru
      _
    %423 = vsyncpa [#allocation3], 1

</llo_original>
